<compile_context>
chip_gen: v7x
topology: tpu7x:2x2x1
jax: 0.10.0
libtpu: 0.0.40
codegen_flags: <defaults>
</compile_context>

<pallas_src>
import functools

import jax
import jax.numpy as jnp
from jax.experimental import pallas as pl
from jax.experimental.pallas import tpu as pltpu


def _round_up(v, m):
    return (v + m - 1) // m * m


def _sample_coords(coord_ref, H, W):
    """Shared coordinate math. Returns (x0, x1, dx, y0, y1, dy), each (1, Pt)."""
    coords = coord_ref[0]                           # (4, Pt)
    g = coords[0:2, :] + coords[2:4, :]             # sample_grid + flow
    gx = g[0:1, :]                                  # normalized x (width)
    gy = g[1:2, :]                                  # normalized y (height)
    # align_corners=True unnormalization; padding_mode='border' -> clip coords.
    ix = jnp.clip((gx + 1.0) * (0.5 * (W - 1)), 0.0, float(W - 1))
    iy = jnp.clip((gy + 1.0) * (0.5 * (H - 1)), 0.0, float(H - 1))
    x0f = jnp.floor(ix)
    y0f = jnp.floor(iy)
    dx = ix - x0f
    dy = iy - y0f
    x0 = x0f.astype(jnp.int32)
    y0 = y0f.astype(jnp.int32)
    x1 = jnp.minimum(x0 + 1, W - 1)
    y1 = jnp.minimum(y0 + 1, H - 1)
    return x0, x1, dx, y0, y1, dy


def _fused_kernel(x_ref, coord_ref, o_ref, *, H, W):
    # x_ref:     (1, C, H*W)  lane-dense image, resident per batch element
    # coord_ref: (1, 4, Pt)   rows 0:2 = base grid (x,y), rows 2:4 = flow (x,y)
    # o_ref:     (1, C, Pt)
    x0, x1, dx, y0, y1, dy = _sample_coords(coord_ref, H, W)
    Pt = coord_ref.shape[2]
    HW = x_ref.shape[2]

    i00 = y0 * W + x0
    i01 = y0 * W + x1
    i10 = y1 * W + x0
    i11 = y1 * W + x1
    w00 = (1.0 - dx) * (1.0 - dy)
    w01 = dx * (1.0 - dy)
    w10 = (1.0 - dx) * dy
    w11 = dx * dy

    # Fused one-hot bilinear operator.  Coincident corners (x0==x1 / y0==y1 at
    # the border) have zero fractional weight, so simple addition stays exact.
    iota = jax.lax.broadcasted_iota(jnp.int32, (HW, Pt), 0)
    k = (jnp.where(iota == i00, w00, 0.0) +
         jnp.where(iota == i01, w01, 0.0) +
         jnp.where(iota == i10, w10, 0.0) +
         jnp.where(iota == i11, w11, 0.0))                      # (HW, Pt)
    # MXU: K = H*W (full systolic-array fill for the small-image case).
    o_ref[0] = jnp.dot(x_ref[0], k, preferred_element_type=jnp.float32)


def _separable_kernel(x_ref, coord_ref, o_ref, *, H, W, C, R_pad, contract_w):
    # x_ref:     (1, C*R_pad, K)  image with the contracted (larger) axis last
    # coord_ref: (1, 4, Pt)
    # o_ref:     (1, C, Pt)
    x0, x1, dx, y0, y1, dy = _sample_coords(coord_ref, H, W)
    Pt = coord_ref.shape[2]
    if contract_w:                      # contract W on the MXU, reduce H on VPU
        c0, c1, dc, K = x0, x1, dx, W
        r0, r1, dr = y0, y1, dy
    else:                               # contract H on the MXU, reduce W on VPU
        c0, c1, dc, K = y0, y1, dy, H
        r0, r1, dr = x0, x1, dx

    kiota = jax.lax.broadcasted_iota(jnp.int32, (K, Pt), 0)
    kc = (jnp.where(kiota == c0, 1.0 - dc, 0.0) +
          jnp.where(kiota == c1, dc, 0.0))                      # (K, Pt)
    riota = jax.lax.broadcasted_iota(jnp.int32, (R_pad, Pt), 0)
    kr = (jnp.where(riota == r0, 1.0 - dr, 0.0) +
          jnp.where(riota == r1, dr, 0.0))                      # (R_pad, Pt)

    # MXU contraction over the larger spatial axis, then a cheap weighted
    # reduce over the smaller, 8-aligned one (reshape is a free relayout).
    # Note: for very large R_pad*Pt this could accumulate over R-chunks instead
    # of materializing the full (C*R_pad, Pt) intermediate.
    t = jnp.dot(x_ref[0], kc, preferred_element_type=jnp.float32)  # (C*R_pad, Pt)
    t = t.reshape(C, R_pad, Pt)
    o_ref[0] = jnp.sum(t * kr[None, :, :], axis=1)                 # (C, Pt)


def spatial_transform(x, flow, sample_grid, *, p_tile=1024, fused_max_hw=4096):
    """Pallas equivalent of SpatialTransform_unit.forward(x, flow, sample_grid)."""
    N, C, H, W = x.shape
    P = H * W

    # ---- pixel-tile / grid-step selection ---------------------------------
    pt = min(_round_up(P, 128), _round_up(p_tile, 128))
    P_pad = _round_up(P, pt)
    n_pt = P_pad // pt
    # Ensure >= 2 total grid steps so both v7x TensorCores get work.
    if N * n_pt < 2 and P_pad >= 256 and P_pad % 256 == 0:
        pt = P_pad // 2
        n_pt = 2

    # ---- single concatenated coordinate input (N, 4, P_pad) ---------------
    coords = jnp.concatenate(
        [sample_grid.reshape(N, P, 2), flow.reshape(N, P, 2)], axis=-1)
    coords = jnp.transpose(coords, (0, 2, 1)).astype(jnp.float32)   # (N, 4, P)
    if P_pad != P:
        # zero coords -> valid in-bounds sample; padded lanes are sliced off.
        coords = jnp.pad(coords, ((0, 0), (0, 0), (0, P_pad - P)))

    fused = P <= fused_max_hw
    if fused:
        # Lane-dense image (C, H*W): full-width DMA, no 8x lane/VMEM waste.
        x_in = x.reshape(N, C, P).astype(jnp.float32)
        kernel = functools.partial(_fused_kernel, H=H, W=W)
        img_spec = pl.BlockSpec((1, C, P), lambda n, p: (n, 0, 0))
        img_bytes = C * P * 4
        scratch_bytes = 2 * P * pt * 4          # one-hot operator + headroom
        flops = N * (2 * C * P * P_pad + 12 * P * P_pad)
    else:
        contract_w = W >= H                     # contract the LARGER axis on MXU
        if contract_w:
            R, K = H, W
            x_l = x                             # (N, C, H, W)
        else:
            R, K = W, H
            x_l = jnp.transpose(x, (0, 1, 3, 2))  # (N, C, W, H)
        R_pad = _round_up(R, 8)                 # makes the in-kernel reshape free
        if R_pad != R:
            x_l = jnp.pad(x_l, ((0, 0), (0, 0), (0, R_pad - R), (0, 0)))
        x_in = x_l.reshape(N, C * R_pad, K).astype(jnp.float32)
        kernel = functools.partial(_separable_kernel, H=H, W=W, C=C,
                                   R_pad=R_pad, contract_w=contract_w)
        img_spec = pl.BlockSpec((1, C * R_pad, K), lambda n, p: (n, 0, 0))
        img_bytes = C * R_pad * K * 4
        scratch_bytes = (K * pt + R_pad * pt + 2 * C * R_pad * pt) * 4
        flops = N * (2 * C * R_pad * K * P_pad + 2 * C * R_pad * P_pad
                     + 6 * (K + R_pad) * P_pad)

    coord_bytes = 4 * pt * 4
    out_bytes = C * pt * 4
    # Double-buffered image/coord/output tiles + in-kernel intermediates.
    # (The resident image could additionally be single-buffered to shave VMEM on
    #  v7x's 64 MiB; at these sizes the double-buffered total is well inside it.)
    vmem_need = 2 * img_bytes + 2 * coord_bytes + 2 * out_bytes + scratch_bytes
    vmem_limit = int(min(64 * 1024 * 1024, max(32 * 1024 * 1024, 2 * vmem_need)))

    cost = pl.CostEstimate(
        flops=int(flops),
        transcendentals=0,
        bytes_accessed=int(N * img_bytes + 4 * (4 * N * P_pad + N * C * P_pad)),
    )

    out = pl.pallas_call(
        kernel,
        out_shape=jax.ShapeDtypeStruct((N, C, P_pad), jnp.float32),
        grid=(N, n_pt),   # pixel axis innermost -> image re-DMA'd only per batch
        in_specs=[
            img_spec,
            pl.BlockSpec((1, 4, pt), lambda n, p: (n, 0, p)),
        ],
        out_specs=pl.BlockSpec((1, C, pt), lambda n, p: (n, 0, p)),
        compiler_params=pltpu.CompilerParams(
            dimension_semantics=("parallel", "parallel"),
            vmem_limit_bytes=vmem_limit,
        ),
        cost_estimate=cost,
    )(x_in, coords)

    return out[:, :, :P].reshape(N, C, H, W)


def reference_grid_sample(x, flow, sample_grid):
    """Pure-JAX reference of torch.grid_sample(bilinear, border, align_corners=True)."""
    grid = sample_grid + flow
    N, C, H, W = x.shape
    gx = grid[..., 0]
    gy = grid[..., 1]
    ix = jnp.clip((gx + 1.0) * 0.5 * (W - 1), 0.0, W - 1)
    iy = jnp.clip((gy + 1.0) * 0.5 * (H - 1), 0.0, H - 1)
    x0 = jnp.floor(ix).astype(jnp.int32)
    y0 = jnp.floor(iy).astype(jnp.int32)
    x1 = jnp.minimum(x0 + 1, W - 1)
    y1 = jnp.minimum(y0 + 1, H - 1)
    dx = ix - x0
    dy = iy - y0
    xf = x.reshape(N, C, H * W)

    def gather(yi, xi):
        flat = (yi * W + xi).reshape(N, 1, H * W)
        flat = jnp.broadcast_to(flat, (N, C, H * W))
        return jnp.take_along_axis(xf, flat, axis=2).reshape(N, C, H, W)

    out = (gather(y0, x0) * ((1 - dx) * (1 - dy))[:, None] +
           gather(y0, x1) * (dx * (1 - dy))[:, None] +
           gather(y1, x0) * ((1 - dx) * dy)[:, None] +
           gather(y1, x1) * (dx * dy)[:, None])
    return out


def _identity_grid(N, H, W):
    ys = jnp.linspace(-1.0, 1.0, H)
    xs = jnp.linspace(-1.0, 1.0, W)
    gy, gx = jnp.meshgrid(ys, xs, indexing="ij")
    return jnp.broadcast_to(jnp.stack([gx, gy], axis=-1), (N, H, W, 2)).astype(jnp.float32)


if __name__ == "__main__":
    key = jax.random.PRNGKey(0)
    k1, k2, k3, k4, k5, k6, k7, k8 = jax.random.split(key, 8)

    # Test 1: module's expected small shapes (fused MXU path).
    N, C, H, W = 2, 4, 16, 16
    x = jax.random.normal(k1, (N, C, H, W), dtype=jnp.float32)
    sample_grid = _identity_grid(N, H, W)
    flow = 0.1 * jax.random.normal(k2, (N, H, W, 2), dtype=jnp.float32)
    out = jax.block_until_ready(spatial_transform(x, flow, sample_grid))
    ref = reference_grid_sample(x, flow, sample_grid)
    assert out.shape == (N, C, H, W)
    assert jnp.allclose(out, ref, atol=1e-5, rtol=1e-5), "mismatch vs reference (test 1)"

    # Test 2: non-128-multiple pixel count exercises the lane-padding path.
    N2, C2, H2, W2 = 2, 4, 8, 12
    x2 = jax.random.normal(k3, (N2, C2, H2, W2), dtype=jnp.float32)
    grid2 = _identity_grid(N2, H2, W2)
    flow2 = 0.2 * jax.random.normal(k4, (N2, H2, W2, 2), dtype=jnp.float32)
    out2 = jax.block_until_ready(spatial_transform(x2, flow2, grid2))
    ref2 = reference_grid_sample(x2, flow2, grid2)
    assert out2.shape == (N2, C2, H2, W2)
    assert jnp.allclose(out2, ref2, atol=1e-5, rtol=1e-5), "mismatch vs reference (test 2)"

    # Test 3: separable path, contract W (wide image).
    N3, C3, H3, W3 = 1, 2, 24, 200
    x3 = jax.random.normal(k5, (N3, C3, H3, W3), dtype=jnp.float32)
    grid3 = _identity_grid(N3, H3, W3)
    flow3 = 0.15 * jax.random.normal(k6, (N3, H3, W3, 2), dtype=jnp.float32)
    out3 = jax.block_until_ready(spatial_transform(x3, flow3, grid3))
    ref3 = reference_grid_sample(x3, flow3, grid3)
    assert out3.shape == (N3, C3, H3, W3)
    assert jnp.allclose(out3, ref3, atol=1e-4, rtol=1e-4), "mismatch vs reference (test 3)"

    # Test 4: separable path, contract H (tall image).
    N4, C4, H4, W4 = 1, 2, 200, 24
    x4 = jax.random.normal(k7, (N4, C4, H4, W4), dtype=jnp.float32)
    grid4 = _identity_grid(N4, H4, W4)
    flow4 = 0.15 * jax.random.normal(k8, (N4, H4, W4, 2), dtype=jnp.float32)
    out4 = jax.block_until_ready(spatial_transform(x4, flow4, grid4))
    ref4 = reference_grid_sample(x4, flow4, grid4)
    assert out4.shape == (N4, C4, H4, W4)
    assert jnp.allclose(out4, ref4, atol=1e-4, rtol=1e-4), "mismatch vs reference (test 4)"

    print("KERNEL_OK")
</pallas_src>

<mosaic_0001>
module attributes {stable_mosaic.version = 11 : i64} {
  func.func @_fused_kernel(%arg0: i32, %arg1: i32, %arg2: memref<1x4x256xf32, #tpu.memory_space<vmem>>, %arg3: memref<1x4x256xf32, #tpu.memory_space<vmem>>, %arg4: memref<1x4x256xf32, #tpu.memory_space<vmem>>) attributes {dimension_semantics = [#tpu.dimension_semantics<parallel>, #tpu.dimension_semantics<parallel>], iteration_bounds = array<i64: 2, 1>, scalar_prefetch = 0 : i64, scratch_operands = 0 : i64, tpu.core_type = #tpu.core_type<tc>, window_params = [{transform_indices = @transform_0, window_bounds = array<i64: 1, 4, 256>}, {transform_indices = @transform_1, window_bounds = array<i64: 1, 4, 256>}, {transform_indices = @transform_2, window_bounds = array<i64: 1, 4, 256>}]} {
    %c0 = arith.constant 0 : index
    %c0_0 = arith.constant 0 : index
    %c0_1 = arith.constant 0 : index
    %0 = vector.load %arg3[%c0, %c0_0, %c0_1] : memref<1x4x256xf32, #tpu.memory_space<vmem>>, vector<1x4x256xf32>
    %1 = vector.shape_cast %0 : vector<1x4x256xf32> to vector<4x256xf32>
    %2 = vector.extract_strided_slice %1 {offsets = [0, 0], sizes = [2, 256], strides = [1, 1]} : vector<4x256xf32> to vector<2x256xf32>
    %3 = vector.extract_strided_slice %1 {offsets = [2, 0], sizes = [2, 256], strides = [1, 1]} : vector<4x256xf32> to vector<2x256xf32>
    %4 = arith.addf %2, %3 : vector<2x256xf32>
    %5 = vector.extract_strided_slice %4 {offsets = [0, 0], sizes = [1, 256], strides = [1, 1]} : vector<2x256xf32> to vector<1x256xf32>
    %6 = vector.extract_strided_slice %4 {offsets = [1, 0], sizes = [1, 256], strides = [1, 1]} : vector<2x256xf32> to vector<1x256xf32>
    %cst = arith.constant 1.000000e+00 : f32
    %7 = vector.broadcast %cst : f32 to vector<1x256xf32>
    %8 = arith.addf %5, %7 : vector<1x256xf32>
    %cst_2 = arith.constant 7.500000e+00 : f32
    %9 = vector.broadcast %cst_2 : f32 to vector<1x256xf32>
    %10 = arith.mulf %8, %9 : vector<1x256xf32>
    %cst_3 = arith.constant 0.000000e+00 : f32
    %cst_4 = arith.constant 1.500000e+01 : f32
    %11 = vector.broadcast %cst_3 : f32 to vector<1x256xf32>
    %12 = arith.maximumf %11, %10 : vector<1x256xf32>
    %13 = vector.broadcast %cst_4 : f32 to vector<1x256xf32>
    %14 = arith.minimumf %13, %12 : vector<1x256xf32>
    %cst_5 = arith.constant 1.000000e+00 : f32
    %15 = vector.broadcast %cst_5 : f32 to vector<1x256xf32>
    %16 = arith.addf %6, %15 : vector<1x256xf32>
    %cst_6 = arith.constant 7.500000e+00 : f32
    %17 = vector.broadcast %cst_6 : f32 to vector<1x256xf32>
    %18 = arith.mulf %16, %17 : vector<1x256xf32>
    %cst_7 = arith.constant 0.000000e+00 : f32
    %cst_8 = arith.constant 1.500000e+01 : f32
    %19 = vector.broadcast %cst_7 : f32 to vector<1x256xf32>
    %20 = arith.maximumf %19, %18 : vector<1x256xf32>
    %21 = vector.broadcast %cst_8 : f32 to vector<1x256xf32>
    %22 = arith.minimumf %21, %20 : vector<1x256xf32>
    %23 = math.floor %14 : vector<1x256xf32>
    %24 = math.floor %22 : vector<1x256xf32>
    %25 = arith.subf %14, %23 : vector<1x256xf32>
    %26 = arith.subf %22, %24 : vector<1x256xf32>
    %27 = arith.fptosi %23 : vector<1x256xf32> to vector<1x256xi32>
    %28 = arith.fptosi %24 : vector<1x256xf32> to vector<1x256xi32>
    %c1_i32 = arith.constant 1 : i32
    %29 = vector.broadcast %c1_i32 : i32 to vector<1x256xi32>
    %30 = arith.addi %27, %29 : vector<1x256xi32>
    %c15_i32 = arith.constant 15 : i32
    %31 = vector.broadcast %c15_i32 : i32 to vector<1x256xi32>
    %32 = arith.minsi %30, %31 : vector<1x256xi32>
    %c1_i32_9 = arith.constant 1 : i32
    %33 = vector.broadcast %c1_i32_9 : i32 to vector<1x256xi32>
    %34 = arith.addi %28, %33 : vector<1x256xi32>
    %c15_i32_10 = arith.constant 15 : i32
    %35 = vector.broadcast %c15_i32_10 : i32 to vector<1x256xi32>
    %36 = arith.minsi %34, %35 : vector<1x256xi32>
    %c16_i32 = arith.constant 16 : i32
    %37 = vector.broadcast %c16_i32 : i32 to vector<1x256xi32>
    %38 = arith.muli %28, %37 : vector<1x256xi32>
    %39 = arith.addi %38, %27 : vector<1x256xi32>
    %c16_i32_11 = arith.constant 16 : i32
    %40 = vector.broadcast %c16_i32_11 : i32 to vector<1x256xi32>
    %41 = arith.muli %28, %40 : vector<1x256xi32>
    %42 = arith.addi %41, %32 : vector<1x256xi32>
    %c16_i32_12 = arith.constant 16 : i32
    %43 = vector.broadcast %c16_i32_12 : i32 to vector<1x256xi32>
    %44 = arith.muli %36, %43 : vector<1x256xi32>
    %45 = arith.addi %44, %27 : vector<1x256xi32>
    %c16_i32_13 = arith.constant 16 : i32
    %46 = vector.broadcast %c16_i32_13 : i32 to vector<1x256xi32>
    %47 = arith.muli %36, %46 : vector<1x256xi32>
    %48 = arith.addi %47, %32 : vector<1x256xi32>
    %cst_14 = arith.constant 1.000000e+00 : f32
    %49 = vector.broadcast %cst_14 : f32 to vector<1x256xf32>
    %50 = arith.subf %49, %25 : vector<1x256xf32>
    %cst_15 = arith.constant 1.000000e+00 : f32
    %51 = vector.broadcast %cst_15 : f32 to vector<1x256xf32>
    %52 = arith.subf %51, %26 : vector<1x256xf32>
    %53 = arith.mulf %50, %52 : vector<1x256xf32>
    %cst_16 = arith.constant 1.000000e+00 : f32
    %54 = vector.broadcast %cst_16 : f32 to vector<1x256xf32>
    %55 = arith.subf %54, %26 : vector<1x256xf32>
    %56 = arith.mulf %25, %55 : vector<1x256xf32>
    %cst_17 = arith.constant 1.000000e+00 : f32
    %57 = vector.broadcast %cst_17 : f32 to vector<1x256xf32>
    %58 = arith.subf %57, %25 : vector<1x256xf32>
    %59 = arith.mulf %58, %26 : vector<1x256xf32>
    %60 = arith.mulf %25, %26 : vector<1x256xf32>
    %61 = tpu.iota {dimensions = array<i32: 0>} : vector<256x256xi32>
    %62 = vector.broadcast %39 : vector<1x256xi32> to vector<256x256xi32>
    %63 = arith.cmpi eq, %61, %62 : vector<256x256xi32>
    %cst_18 = arith.constant 0.000000e+00 : f32
    %64 = vector.shape_cast %53 : vector<1x256xf32> to vector<1x256xf32>
    %65 = vector.broadcast %64 : vector<1x256xf32> to vector<256x256xf32>
    %66 = vector.broadcast %cst_18 : f32 to vector<256x256xf32>
    %67 = arith.select %63, %65, %66 : vector<256x256xi1>, vector<256x256xf32>
    %68 = vector.broadcast %42 : vector<1x256xi32> to vector<256x256xi32>
    %69 = arith.cmpi eq, %61, %68 : vector<256x256xi32>
    %cst_19 = arith.constant 0.000000e+00 : f32
    %70 = vector.shape_cast %56 : vector<1x256xf32> to vector<1x256xf32>
    %71 = vector.broadcast %70 : vector<1x256xf32> to vector<256x256xf32>
    %72 = vector.broadcast %cst_19 : f32 to vector<256x256xf32>
    %73 = arith.select %69, %71, %72 : vector<256x256xi1>, vector<256x256xf32>
    %74 = arith.addf %67, %73 : vector<256x256xf32>
    %75 = vector.broadcast %45 : vector<1x256xi32> to vector<256x256xi32>
    %76 = arith.cmpi eq, %61, %75 : vector<256x256xi32>
    %cst_20 = arith.constant 0.000000e+00 : f32
    %77 = vector.shape_cast %59 : vector<1x256xf32> to vector<1x256xf32>
    %78 = vector.broadcast %77 : vector<1x256xf32> to vector<256x256xf32>
    %79 = vector.broadcast %cst_20 : f32 to vector<256x256xf32>
    %80 = arith.select %76, %78, %79 : vector<256x256xi1>, vector<256x256xf32>
    %81 = arith.addf %74, %80 : vector<256x256xf32>
    %82 = vector.broadcast %48 : vector<1x256xi32> to vector<256x256xi32>
    %83 = arith.cmpi eq, %61, %82 : vector<256x256xi32>
    %cst_21 = arith.constant 0.000000e+00 : f32
    %84 = vector.shape_cast %60 : vector<1x256xf32> to vector<1x256xf32>
    %85 = vector.broadcast %84 : vector<1x256xf32> to vector<256x256xf32>
    %86 = vector.broadcast %cst_21 : f32 to vector<256x256xf32>
    %87 = arith.select %83, %85, %86 : vector<256x256xi1>, vector<256x256xf32>
    %88 = arith.addf %81, %87 : vector<256x256xf32>
    %c0_22 = arith.constant 0 : index
    %c0_23 = arith.constant 0 : index
    %c0_24 = arith.constant 0 : index
    %89 = vector.load %arg2[%c0_22, %c0_23, %c0_24] : memref<1x4x256xf32, #tpu.memory_space<vmem>>, vector<1x4x256xf32>
    %90 = vector.shape_cast %89 : vector<1x4x256xf32> to vector<4x256xf32>
    %cst_25 = arith.constant dense<0.000000e+00> : vector<4x256xf32>
    %91 = tpu.matmul %90, %88, %cst_25 {dimension_numbers = #tpu.dot_dimension_numbers<[1], [0], [0], [1], [0, 0, 1, 1], [], []>} : vector<4x256xf32>, vector<256x256xf32>, vector<4x256xf32> -> vector<4x256xf32>
    %c0_26 = arith.constant 0 : index
    %c0_27 = arith.constant 0 : index
    %c0_28 = arith.constant 0 : index
    %92 = vector.load %arg4[%c0_26, %c0_27, %c0_28] : memref<1x4x256xf32, #tpu.memory_space<vmem>>, vector<1x4x256xf32>
    %93 = vector.shape_cast %92 : vector<1x4x256xf32> to vector<4x256xf32>
    %94 = vector.shape_cast %91 : vector<4x256xf32> to vector<1x4x256xf32>
    tpu.vector_store %arg4[%c0_26, %c0_27, %c0_28], %94 {strides = array<i32>} : memref<1x4x256xf32, #tpu.memory_space<vmem>>, vector<1x4x256xf32>,
    return
  }
  func.func @transform_0(%arg0: i32, %arg1: i32) -> (i32, i32, i32) {
    %c0_i32 = arith.constant 0 : i32
    %c0_i32_0 = arith.constant 0 : i32
    %c0_i32_1 = arith.constant 0 : i32
    return %arg0, %c0_i32, %c0_i32_0 : i32, i32, i32
  }
  func.func @transform_1(%arg0: i32, %arg1: i32) -> (i32, i32, i32) {
    %c0_i32 = arith.constant 0 : i32
    %c0_i32_0 = arith.constant 0 : i32
    return %arg0, %c0_i32, %arg1 : i32, i32, i32
  }
  func.func @transform_2(%arg0: i32, %arg1: i32) -> (i32, i32, i32) {
    %c0_i32 = arith.constant 0 : i32
    %c0_i32_0 = arith.constant 0 : i32
    return %arg0, %c0_i32, %arg1 : i32, i32, i32
  }
}

</mosaic_0001>

<llo_original>
// kernel: tpu_custom_call.1
$region0: #{tpu_custom_call.1}
  #allocation0 [shape = 'u32[]', space=smem, size = 0x4, offset = 0x4, fixed_abs, tag = 'smem constant byte address 0x4 - core index']
  #allocation1 [shape = 'u32[144,128]{1,0:T(1,128)}', space=vmem, size = 0x12000, scoped, tag = 'internal scratch']
  %s0 = inlined_call_operand.hbm [shape: f32[2,4,256], index: 0, kind: input, shape index: {}]
  %s1 = inlined_call_operand.hbm [shape: f32[2,4,256], index: 1, kind: input, shape index: {}]
  %s2 = inlined_call_operand.hbm [shape: f32[2,4,256], index: 2, kind: output, shape index: {}]
  %s3 = sld [smem:[#allocation0]]
  $region49: #{tpu_custom_call.1} parent=0
    _
  %s5 = ssub.s32 1, %s3
  %s6 = scalar_select 0, %s5, %s3
  $region1: #{tpu_custom_call.1} parent=0
    #allocation2 [shape = 'u8[8192]{0}', space=vmem, size = 0x2000, scoped, tag = 'input window, operand 0']
    #allocation3 [shape = 's32[2]{0}', space=sflag, size = 0x8, scoped, tag = 'scoped memory for tpu_custom_call.1']
    #allocation4 [shape = 's32[2]{0}', space=sflag, size = 0x8, scoped, tag = 'scoped memory for tpu_custom_call.1']
    #allocation5 [shape = 'u8[8192]{0}', space=vmem, size = 0x2000, scoped, tag = 'input window, operand 1']
    #allocation6 [shape = 's32[2]{0}', space=sflag, size = 0x8, scoped, tag = 'scoped memory for tpu_custom_call.1']
    #allocation7 [shape = 'u8[8192]{0}', space=vmem, size = 0x2000, scoped, tag = 'output window, operand 0']
    %7 = vsyncpa [#allocation3], 0
    %s8 = scalar_lea.sflag [#allocation3], 1
    %9 = vsyncpa %s8, 0
    %10 = vsyncpa [#allocation6], 0
    %s11 = scalar_lea.sflag [#allocation6], 1
    %12 = vsyncpa %s11, 0
    %13 = vsyncpa [#allocation4], 0
    %s14 = scalar_lea.sflag [#allocation4], 1
    %15 = vsyncpa %s14, 0
    loop: start=0, step=1, limit=4
    $region2: #{tpu_custom_call.1} parent=1 // loop_pre_header
      _
    $region3: #{tpu_custom_call.1} parent=1 // loop_header
      %s17 = sphi 0, %s21
      %p18 = scmp.ge.s32.totalorder %s17, 4
      %s24 = sphi 0, %s36
      %s25 = sphi 0, %s32
      %s26 = sphi 0, %s24
      %s27 = sphi 0, %s25
      %s28 = sphi 0, %s26
      %s29 = sphi 0, %s27
      %s39 = sphi 0, %s41
      %s42 = sphi 0, %s39
      %s43 = sphi 0, %s42
      %s59 = sphi 0, %s43
      %s67 = sphi 0, %s69
      %s70 = sphi 0, %s67
      %s71 = sphi 0, %s70
      %s87 = sphi 0, %s71
      %s95 = sphi 0, %s97
      %s98 = sphi 0, %s95
      %s99 = sphi 0, %s98
      %s115 = sphi 0, %s99
    $region4: #{tpu_custom_call.1} parent=1 // loop_header_branch
      %20 = sbr.rel (%p18) target = $region8
    $region5: #{tpu_custom_call.1} parent=1 // loop_body
      %s22 = ssub.s32 %s17, 1
      %s23 = ssub.s32 %s17, 2
      %s30 = sadd.s32 1, %s25
      %p31 = scmp.ge.s32.totalorder %s30, 1
      %s32 = scalar_select %p31, 0, %s30
      %s33 = sadd.s32 1, %s24
      %s34 = scalar_select %p31, %s33, %s24
      %p35 = scmp.ge.s32.totalorder %s34, 2
      %s36 = scalar_select %p35, 0, %s34
      %s37 = ssub.s32 %s24, %s36
      %p38 = scmp.eq.s32.totalorder %s37, 0
      %s40 = sadd.s32 %s39, 1
      %s41 = scalar_select %p38, %s39, %s40
      %p44 = pneg %p38
      %p45 = scmp.eq.s32.totalorder %s17, 1
      %p46 = por %p44, %p45
      %p47 = scmp.ne.s32.totalorder %s39, %s42
      %p48 = scmp.eq.s32.totalorder %s17, 0
      %p49 = por %p47, %p48
      %p50 = scmp.ne.s32.totalorder %s39, %s42
      %p51 = scmp.eq.s32.totalorder %s22, 1
      %p52 = por %p50, %p51
      %p53 = scmp.ne.s32.totalorder %s42, %s43
      %p54 = scmp.eq.s32.totalorder %s22, 0
      %p55 = por %p53, %p54
      %p56 = scmp.ne.s32.totalorder %s42, %s43
      %p57 = scmp.eq.s32.totalorder %s23, 1
      %p58 = por %p56, %p57
      %p60 = scmp.ne.s32.totalorder %s43, %s59
      %p61 = scmp.eq.s32.totalorder %s23, 0
      %p62 = por %p60, %p61
      %s63 = ssub.s32 %s24, %s36
      %s64 = ssub.s32 %s25, %s32
      %s65 = sor.u32 %s63, %s64
      %p66 = scmp.eq.s32.totalorder %s65, 0
      %s68 = sadd.s32 %s67, 1
      %s69 = scalar_select %p66, %s67, %s68
      %p72 = pneg %p66
      %p73 = scmp.eq.s32.totalorder %s17, 1
      %p74 = por %p72, %p73
      %p75 = scmp.ne.s32.totalorder %s67, %s70
      %p76 = scmp.eq.s32.totalorder %s17, 0
      %p77 = por %p75, %p76
      %p78 = scmp.ne.s32.totalorder %s67, %s70
      %p79 = scmp.eq.s32.totalorder %s22, 1
      %p80 = por %p78, %p79
      %p81 = scmp.ne.s32.totalorder %s70, %s71
      %p82 = scmp.eq.s32.totalorder %s22, 0
      %p83 = por %p81, %p82
      %p84 = scmp.ne.s32.totalorder %s70, %s71
      %p85 = scmp.eq.s32.totalorder %s23, 1
      %p86 = por %p84, %p85
      %p88 = scmp.ne.s32.totalorder %s71, %s87
      %p89 = scmp.eq.s32.totalorder %s23, 0
      %p90 = por %p88, %p89
      %s91 = ssub.s32 %s24, %s36
      %s92 = ssub.s32 %s25, %s32
      %s93 = sor.u32 %s91, %s92
      %p94 = scmp.eq.s32.totalorder %s93, 0
      %s96 = sadd.s32 %s95, 1
      %s97 = scalar_select %p94, %s95, %s96
      %p100 = pneg %p94
      %p101 = scmp.eq.s32.totalorder %s17, 1
      %p102 = por %p100, %p101
      %p103 = scmp.ne.s32.totalorder %s95, %s98
      %p104 = scmp.eq.s32.totalorder %s17, 0
      %p105 = por %p103, %p104
      %p106 = scmp.ne.s32.totalorder %s95, %s98
      %p107 = scmp.eq.s32.totalorder %s22, 1
      %p108 = por %p106, %p107
      %p109 = scmp.ne.s32.totalorder %s98, %s99
      %p110 = scmp.eq.s32.totalorder %s22, 0
      %p111 = por %p109, %p110
      %p112 = scmp.ne.s32.totalorder %s98, %s99
      %p113 = scmp.eq.s32.totalorder %s23, 1
      %p114 = por %p112, %p113
      %p116 = scmp.ne.s32.totalorder %s99, %s115
      %p117 = scmp.eq.s32.totalorder %s23, 0
      %p118 = por %p116, %p117
      %p119 = scmp.le.s32.totalorder 1, %s17
      %p120 = scmp.lt.s32.totalorder %s17, 3
      %p121 = pnand %p119, %p120
      %p122 = pneg %p121
      // Predicated region
      $region9: #{tpu_custom_call.1} parent=5 // pred_check
        _
      $region10: #{tpu_custom_call.1} parent=5 // pred_check_branch
        %124 = sbr.rel (%p121) target = $region12
      $region11: #{tpu_custom_call.1} parent=5 // pred_region
        %s125 = ssub.s32 %s17, 1
      $region12: #{tpu_custom_call.1} parent=5 // pred_fallthru
        _
      %p126 = scmp.lt.s32.totalorder %s17, 2
      // Predicated region
      $region13: #{tpu_custom_call.1} parent=5 // pred_check
        %p127 = pneg %p126
      $region14: #{tpu_custom_call.1} parent=5 // pred_check_branch
        %129 = sbr.rel (%p127) target = $region16
      $region15: #{tpu_custom_call.1} parent=5 // pred_region
        // Predicated region
        $region17: #{tpu_custom_call.1} parent=15 // pred_check
          %p130 = pneg %p49
        $region18: #{tpu_custom_call.1} parent=15 // pred_check_branch
          %132 = sbr.rel (%p130) target = $region20
        $region19: #{tpu_custom_call.1} parent=15 // pred_region
          %s133 = sand.u32 %s39, 1
          %s134 = scalar_lea.sflag [#allocation3], %s133
          %s135 = sand.u32 %s39, 1
          %s136 = smul.addr %s135, 8
          %s137 = scalar_lea.vmem [#allocation2], %s136
          %s139 = ssub.s32 128, 128
          %140 = vsyncadd %s134, %s139
          %s141 = smul.addr %s24, 2
          %s142 = smul.addr %s141, 64
          %s143 = scalar_lea.hbm %s0, %s142
          %s145 = sshll.u32 %s137, 4
          %s146 = int_to_ptr.vmem [resolvable:$true] %s145
          %148 = dma.hbm_to_vmem [thread:$0]  %s143, 128, %s146, %s134
        $region20: #{tpu_custom_call.1} parent=15 // pred_fallthru
          _
        // Predicated region
        $region21: #{tpu_custom_call.1} parent=15 // pred_check
          %p149 = pneg %p77
        $region22: #{tpu_custom_call.1} parent=15 // pred_check_branch
          %151 = sbr.rel (%p149) target = $region24
        $region23: #{tpu_custom_call.1} parent=15 // pred_region
          %s152 = sand.u32 %s67, 1
          %s153 = scalar_lea.sflag [#allocation6], %s152
          %s154 = sand.u32 %s67, 1
          %s155 = smul.addr %s154, 8
          %s156 = scalar_lea.vmem [#allocation5], %s155
          %s157 = smul.u32 2, %s25
          %s159 = ssub.s32 128, 128
          %160 = vsyncadd %s153, %s159
          %s161 = smul.addr %s24, 2
          %s162 = sadd.s32 %s157, %s161
          %s163 = smul.addr %s162, 64
          %s164 = scalar_lea.hbm %s1, %s163
          %s166 = sshll.u32 %s156, 4
          %s167 = int_to_ptr.vmem [resolvable:$true] %s166
          %169 = dma.hbm_to_vmem [thread:$0]  %s164, 128, %s167, %s153
        $region24: #{tpu_custom_call.1} parent=15 // pred_fallthru
          _
      $region16: #{tpu_custom_call.1} parent=5 // pred_fallthru
        _
      %p170 = scmp.le.s32.totalorder 1, %s17
      %p171 = scmp.lt.s32.totalorder %s17, 3
      %p172 = pnand %p170, %p171
      %p173 = pneg %p172
      // Predicated region
      $region25: #{tpu_custom_call.1} parent=5 // pred_check
        _
      $region26: #{tpu_custom_call.1} parent=5 // pred_check_branch
        %175 = sbr.rel (%p172) target = $region28
      $region27: #{tpu_custom_call.1} parent=5 // pred_region
        %s176 = ssub.s32 %s17, 1
        %s177 = sand.u32 %s42, 1
        %s178 = scalar_lea.sflag [#allocation3], %s177
        %s179 = sand.u32 %s42, 1
        %s180 = smul.addr %s179, 8
        %s181 = scalar_lea.vmem [#allocation2], %s180
        // Predicated region
        $region29: #{tpu_custom_call.1} parent=27 // pred_check
          %p182 = pneg %p55
        $region30: #{tpu_custom_call.1} parent=27 // pred_check_branch
          %184 = sbr.rel (%p182) target = $region32
        $region31: #{tpu_custom_call.1} parent=27 // pred_region
          %185 = dma.done %s178, 128
        $region32: #{tpu_custom_call.1} parent=27 // pred_fallthru
          _
        %s186 = sand.u32 %s70, 1
        %s187 = scalar_lea.sflag [#allocation6], %s186
        %s188 = sand.u32 %s70, 1
        %s189 = smul.addr %s188, 8
        %s190 = scalar_lea.vmem [#allocation5], %s189
        // Predicated region
        $region33: #{tpu_custom_call.1} parent=27 // pred_check
          %p191 = pneg %p83
        $region34: #{tpu_custom_call.1} parent=27 // pred_check_branch
          %193 = sbr.rel (%p191) target = $region36
        $region35: #{tpu_custom_call.1} parent=27 // pred_region
          %194 = dma.done %s187, 128
        $region36: #{tpu_custom_call.1} parent=27 // pred_fallthru
          _
        %s195 = sand.u32 %s42, 1
        %s196 = scalar_lea.sflag [#allocation3], %s195
        %s197 = sand.u32 %s42, 1
        %s198 = smul.addr %s197, 8
        %s199 = scalar_lea.vmem [#allocation2], %s198
        %p200 = pneg %p55
        %p201 = pneg %p52
        %s202 = sand.u32 %s70, 1
        %s203 = scalar_lea.sflag [#allocation6], %s202
        %s204 = sand.u32 %s70, 1
        %s205 = smul.addr %s204, 8
        %s206 = scalar_lea.vmem [#allocation5], %s205
        %p207 = pneg %p83
        %p208 = pneg %p80
        %p209 = pneg %p111
        %p210 = pneg %p108
        %s211 = sand.u32 %s98, 1
        %s212 = scalar_lea.sflag [#allocation4], %s211
        %s213 = sand.u32 %s98, 1
        %s214 = smul.addr %s213, 8
        %s215 = scalar_lea.vmem [#allocation7], %s214
        %s216 = smul.u32 2, %s27
        %s217 = smul.u32 2, %s27
        %v218 = vld [vmem:[%s190] sm:$0xff]
        %v220 = vrot.slane %v218, 6
        %v221 = vrot.slane %v220, 4
        %v223 = vadd.f32 %v218, %v221
        %v224 = vadd.f32 %v223, 1.0
        %v225 = vmul.f32 %v224, 7.5
        %v226 = vmax.f32 %v225, 0.0
        %v227 = vmin.f32 %v226, 15.0
        %v228 = vfloor.f32 %v227
        %v229 = vsub.f32 %v227, %v228
        %v230 = vcvt.f32.s32.to.zero.pseudo %v228
        %v231 = vadd.s32 %v230, 1
        %vm232 = vcmp.lt.s32.totalorder %v231, 15
        %v233 = vsel %vm232, %v231, 15
        %v234 = vmul.u32 %v230, 16
        %v235 = vrot.slane %v230, 7
        %v236 = vadd.s32 %v234, %v235
        %v237 = vrot.slane %v233, 7
        %v238 = vadd.s32 %v234, %v237
        %v239 = vmul.u32 %v233, 16
        %v240 = vadd.s32 %v239, %v235
        %v241 = vadd.s32 %v239, %v237
        %v242 = vsub.f32 1.0, %v229
        %v244 = vrot.slane %v242, 5
        %v245 = vrot.slane %v244, 4
        %v247 = vmul.f32 %v242, %v245
        %v248 = vmul.f32 %v229, %v245
        %v250 = vrot.slane %v229, 5
        %v251 = vrot.slane %v250, 4
        %v253 = vmul.f32 %v242, %v251
        %v254 = vmul.f32 %v229, %v251
        %v255 = vlaneseq
        %v256 = vshrl.u32 %v255, 7
        %v257 = vadd.s32 %v256, 8
        %v258 = vadd.s32 %v256, 16
        %v259 = vadd.s32 %v256, 24
        %v260 = vadd.s32 %v256, 32
        %v261 = vadd.s32 %v256, 40
        %v262 = vadd.s32 %v256, 48
        %v263 = vadd.s32 %v256, 56
        %v264 = vadd.s32 %v256, 64
        %v265 = vadd.s32 %v256, 72
        %v266 = vadd.s32 %v256, 80
        %v267 = vadd.s32 %v256, 88
        %v268 = vadd.s32 %v256, 96
        %v269 = vadd.s32 %v256, 104
        %v270 = vadd.s32 %v256, 112
        %v271 = vadd.s32 %v256, 120
        %v272 = vadd.s32 %v256, 128
        %v273 = vadd.s32 %v256, 136
        %v274 = vadd.s32 %v256, 144
        %v275 = vadd.s32 %v256, 152
        %v276 = vadd.s32 %v256, 160
        %v277 = vadd.s32 %v256, 168
        %v278 = vadd.s32 %v256, 176
        %v279 = vadd.s32 %v256, 184
        %v280 = vadd.s32 %v256, 192
        %v281 = vadd.s32 %v256, 200
        %v282 = vadd.s32 %v256, 208
        %v283 = vadd.s32 %v256, 216
        %v284 = vadd.s32 %v256, 224
        %v285 = vadd.s32 %v256, 232
        %v286 = vadd.s32 %v256, 240
        %v287 = vadd.s32 %v256, 248
        %v288 = vlaneseq
        %v289 = vshrl.u32 %v288, 7
        %v290 = vsub.s32 1, %v289
        %v291 = vrot.slane %v236, %v290
        %v292 = vlaneseq
        %v293 = vshrl.u32 %v292, 7
        %v294 = vsub.s32 5, %v293
        %v295 = vrot.slane %v236, %v294
        %v296 = vlaneseq
        %v297 = vshrl.u32 %v296, 7
        %v298 = vsub.s32 1, %v297
        %v299 = vrot.slane %v291, %v298
        %v300 = vlaneseq
        %v301 = vshrl.u32 %v300, 7
        %v302 = vsub.s32 1, %v301
        %v303 = vrot.slane %v295, %v302
        %vm304 = vcmp.eq.s32.totalorder %v256, %v299
        %vm305 = vcmp.eq.s32.totalorder %v256, %v303
        %vm306 = vcmp.eq.s32.totalorder %v257, %v299
        %vm307 = vcmp.eq.s32.totalorder %v257, %v303
        %vm308 = vcmp.eq.s32.totalorder %v258, %v299
        %vm309 = vcmp.eq.s32.totalorder %v258, %v303
        %vm310 = vcmp.eq.s32.totalorder %v259, %v299
        %vm311 = vcmp.eq.s32.totalorder %v259, %v303
        %vm312 = vcmp.eq.s32.totalorder %v260, %v299
        %vm313 = vcmp.eq.s32.totalorder %v260, %v303
        %vm314 = vcmp.eq.s32.totalorder %v261, %v299
        %vm315 = vcmp.eq.s32.totalorder %v261, %v303
        %vm316 = vcmp.eq.s32.totalorder %v262, %v299
        %vm317 = vcmp.eq.s32.totalorder %v262, %v303
        %vm318 = vcmp.eq.s32.totalorder %v263, %v299
        %vm319 = vcmp.eq.s32.totalorder %v263, %v303
        %vm320 = vcmp.eq.s32.totalorder %v264, %v299
        %vm321 = vcmp.eq.s32.totalorder %v264, %v303
        %vm322 = vcmp.eq.s32.totalorder %v265, %v299
        %vm323 = vcmp.eq.s32.totalorder %v265, %v303
        %vm324 = vcmp.eq.s32.totalorder %v266, %v299
        %vm325 = vcmp.eq.s32.totalorder %v266, %v303
        %vm326 = vcmp.eq.s32.totalorder %v267, %v299
        %vm327 = vcmp.eq.s32.totalorder %v267, %v303
        %vm328 = vcmp.eq.s32.totalorder %v268, %v299
        %vm329 = vcmp.eq.s32.totalorder %v268, %v303
        %vm330 = vcmp.eq.s32.totalorder %v269, %v299
        %vm331 = vcmp.eq.s32.totalorder %v269, %v303
        %vm332 = vcmp.eq.s32.totalorder %v270, %v299
        %vm333 = vcmp.eq.s32.totalorder %v270, %v303
        %vm334 = vcmp.eq.s32.totalorder %v271, %v299
        %vm335 = vcmp.eq.s32.totalorder %v271, %v303
        %vm336 = vcmp.eq.s32.totalorder %v272, %v299
        %vm337 = vcmp.eq.s32.totalorder %v272, %v303
        %vm338 = vcmp.eq.s32.totalorder %v273, %v299
        %vm339 = vcmp.eq.s32.totalorder %v273, %v303
        %vm340 = vcmp.eq.s32.totalorder %v274, %v299
        %vm341 = vcmp.eq.s32.totalorder %v274, %v303
        %vm342 = vcmp.eq.s32.totalorder %v275, %v299
        %vm343 = vcmp.eq.s32.totalorder %v275, %v303
        %vm344 = vcmp.eq.s32.totalorder %v276, %v299
        %vm345 = vcmp.eq.s32.totalorder %v276, %v303
        %vm346 = vcmp.eq.s32.totalorder %v277, %v299
        %vm347 = vcmp.eq.s32.totalorder %v277, %v303
        %vm348 = vcmp.eq.s32.totalorder %v278, %v299
        %vm349 = vcmp.eq.s32.totalorder %v278, %v303
        %vm350 = vcmp.eq.s32.totalorder %v279, %v299
        %vm351 = vcmp.eq.s32.totalorder %v279, %v303
        %vm352 = vcmp.eq.s32.totalorder %v280, %v299
        %vm353 = vcmp.eq.s32.totalorder %v280, %v303
        %vm354 = vcmp.eq.s32.totalorder %v281, %v299
        %vm355 = vcmp.eq.s32.totalorder %v281, %v303
        %vm356 = vcmp.eq.s32.totalorder %v282, %v299
        %vm357 = vcmp.eq.s32.totalorder %v282, %v303
        %vm358 = vcmp.eq.s32.totalorder %v283, %v299
        %vm359 = vcmp.eq.s32.totalorder %v283, %v303
        %vm360 = vcmp.eq.s32.totalorder %v284, %v299
        %vm361 = vcmp.eq.s32.totalorder %v284, %v303
        %vm362 = vcmp.eq.s32.totalorder %v285, %v299
        %vm363 = vcmp.eq.s32.totalorder %v285, %v303
        %vm364 = vcmp.eq.s32.totalorder %v286, %v299
        %vm365 = vcmp.eq.s32.totalorder %v286, %v303
        %vm366 = vcmp.eq.s32.totalorder %v287, %v299
        %vm367 = vcmp.eq.s32.totalorder %v287, %v303
        %v369 = vlaneseq
        %v370 = vshrl.u32 %v369, 7
        %v371 = vsub.s32 0, %v370
        %v372 = vrot.slane %v247, %v371
        %v373 = vlaneseq
        %v374 = vshrl.u32 %v373, 7
        %v375 = vsub.s32 4, %v374
        %v376 = vrot.slane %v247, %v375
        %v379 = vlaneseq
        %v380 = vshrl.u32 %v379, 7
        %v381 = vsub.s32 0, %v380
        %v382 = vrot.slane %v372, %v381
        %v383 = vlaneseq
        %v384 = vshrl.u32 %v383, 7
        %v385 = vsub.s32 0, %v384
        %v386 = vrot.slane %v376, %v385
        %v387 = vsel %vm304, %v382, 0.0
        %v388 = vsel %vm305, %v386, 0.0
        %v389 = vsel %vm306, %v382, 0.0
        %v390 = vsel %vm307, %v386, 0.0
        %v391 = vsel %vm308, %v382, 0.0
        %v392 = vsel %vm309, %v386, 0.0
        %v393 = vsel %vm310, %v382, 0.0
        %v394 = vsel %vm311, %v386, 0.0
        %v395 = vsel %vm312, %v382, 0.0
        %v396 = vsel %vm313, %v386, 0.0
        %v397 = vsel %vm314, %v382, 0.0
        %v398 = vsel %vm315, %v386, 0.0
        %v399 = vsel %vm316, %v382, 0.0
        %v400 = vsel %vm317, %v386, 0.0
        %v401 = vsel %vm318, %v382, 0.0
        %v402 = vsel %vm319, %v386, 0.0
        %v403 = vsel %vm320, %v382, 0.0
        %v404 = vsel %vm321, %v386, 0.0
        %v405 = vsel %vm322, %v382, 0.0
        %v406 = vsel %vm323, %v386, 0.0
        %v407 = vsel %vm324, %v382, 0.0
        %v408 = vsel %vm325, %v386, 0.0
        %v409 = vsel %vm326, %v382, 0.0
        %v410 = vsel %vm327, %v386, 0.0
        %v411 = vsel %vm328, %v382, 0.0
        %v412 = vsel %vm329, %v386, 0.0
        %v413 = vsel %vm330, %v382, 0.0
        %v414 = vsel %vm331, %v386, 0.0
        %v415 = vsel %vm332, %v382, 0.0
        %v416 = vsel %vm333, %v386, 0.0
        %v417 = vsel %vm334, %v382, 0.0
        %v418 = vsel %vm335, %v386, 0.0
        %v419 = vsel %vm336, %v382, 0.0
        %v420 = vsel %vm337, %v386, 0.0
        %v421 = vsel %vm338, %v382, 0.0
        %v422 = vsel %vm339, %v386, 0.0
        %v423 = vsel %vm340, %v382, 0.0
        %v424 = vsel %vm341, %v386, 0.0
        %v425 = vsel %vm342, %v382, 0.0
        %v426 = vsel %vm343, %v386, 0.0
        %v427 = vsel %vm344, %v382, 0.0
        %v428 = vsel %vm345, %v386, 0.0
        %v429 = vsel %vm346, %v382, 0.0
        %v430 = vsel %vm347, %v386, 0.0
        %v431 = vsel %vm348, %v382, 0.0
        %v432 = vsel %vm349, %v386, 0.0
        %v433 = vsel %vm350, %v382, 0.0
        %v434 = vsel %vm351, %v386, 0.0
        %v435 = vsel %vm352, %v382, 0.0
        %v436 = vsel %vm353, %v386, 0.0
        %v437 = vsel %vm354, %v382, 0.0
        %v438 = vsel %vm355, %v386, 0.0
        %v439 = vsel %vm356, %v382, 0.0
        %v440 = vsel %vm357, %v386, 0.0
        %v441 = vsel %vm358, %v382, 0.0
        %v442 = vsel %vm359, %v386, 0.0
        %v443 = vsel %vm360, %v382, 0.0
        %v444 = vsel %vm361, %v386, 0.0
        %v445 = vsel %vm362, %v382, 0.0
        %v446 = vsel %vm363, %v386, 0.0
        %v447 = vsel %vm364, %v382, 0.0
        %v448 = vsel %vm365, %v386, 0.0
        %v449 = vsel %vm366, %v382, 0.0
        %v450 = vsel %vm367, %v386, 0.0
        %v451 = vlaneseq
        %v452 = vshrl.u32 %v451, 7
        %v453 = vsub.s32 1, %v452
        %v454 = vrot.slane %v238, %v453
        %v455 = vlaneseq
        %v456 = vshrl.u32 %v455, 7
        %v457 = vsub.s32 5, %v456
        %v458 = vrot.slane %v238, %v457
        %v459 = vlaneseq
        %v460 = vshrl.u32 %v459, 7
        %v461 = vsub.s32 1, %v460
        %v462 = vrot.slane %v454, %v461
        %v463 = vlaneseq
        %v464 = vshrl.u32 %v463, 7
        %v465 = vsub.s32 1, %v464
        %v466 = vrot.slane %v458, %v465
        %vm467 = vcmp.eq.s32.totalorder %v256, %v462
        %vm468 = vcmp.eq.s32.totalorder %v256, %v466
        %vm469 = vcmp.eq.s32.totalorder %v257, %v462
        %vm470 = vcmp.eq.s32.totalorder %v257, %v466
        %vm471 = vcmp.eq.s32.totalorder %v258, %v462
        %vm472 = vcmp.eq.s32.totalorder %v258, %v466
        %vm473 = vcmp.eq.s32.totalorder %v259, %v462
        %vm474 = vcmp.eq.s32.totalorder %v259, %v466
        %vm475 = vcmp.eq.s32.totalorder %v260, %v462
        %vm476 = vcmp.eq.s32.totalorder %v260, %v466
        %vm477 = vcmp.eq.s32.totalorder %v261, %v462
        %vm478 = vcmp.eq.s32.totalorder %v261, %v466
        %vm479 = vcmp.eq.s32.totalorder %v262, %v462
        %vm480 = vcmp.eq.s32.totalorder %v262, %v466
        %vm481 = vcmp.eq.s32.totalorder %v263, %v462
        %vm482 = vcmp.eq.s32.totalorder %v263, %v466
        %vm483 = vcmp.eq.s32.totalorder %v264, %v462
        %vm484 = vcmp.eq.s32.totalorder %v264, %v466
        %vm485 = vcmp.eq.s32.totalorder %v265, %v462
        %vm486 = vcmp.eq.s32.totalorder %v265, %v466
        %vm487 = vcmp.eq.s32.totalorder %v266, %v462
        %vm488 = vcmp.eq.s32.totalorder %v266, %v466
        %vm489 = vcmp.eq.s32.totalorder %v267, %v462
        %vm490 = vcmp.eq.s32.totalorder %v267, %v466
        %vm491 = vcmp.eq.s32.totalorder %v268, %v462
        %vm492 = vcmp.eq.s32.totalorder %v268, %v466
        %vm493 = vcmp.eq.s32.totalorder %v269, %v462
        %vm494 = vcmp.eq.s32.totalorder %v269, %v466
        %vm495 = vcmp.eq.s32.totalorder %v270, %v462
        %vm496 = vcmp.eq.s32.totalorder %v270, %v466
        %vm497 = vcmp.eq.s32.totalorder %v271, %v462
        %vm498 = vcmp.eq.s32.totalorder %v271, %v466
        %vm499 = vcmp.eq.s32.totalorder %v272, %v462
        %vm500 = vcmp.eq.s32.totalorder %v272, %v466
        %vm501 = vcmp.eq.s32.totalorder %v273, %v462
        %vm502 = vcmp.eq.s32.totalorder %v273, %v466
        %vm503 = vcmp.eq.s32.totalorder %v274, %v462
        %vm504 = vcmp.eq.s32.totalorder %v274, %v466
        %vm505 = vcmp.eq.s32.totalorder %v275, %v462
        %vm506 = vcmp.eq.s32.totalorder %v275, %v466
        %vm507 = vcmp.eq.s32.totalorder %v276, %v462
        %vm508 = vcmp.eq.s32.totalorder %v276, %v466
        %vm509 = vcmp.eq.s32.totalorder %v277, %v462
        %vm510 = vcmp.eq.s32.totalorder %v277, %v466
        %vm511 = vcmp.eq.s32.totalorder %v278, %v462
        %vm512 = vcmp.eq.s32.totalorder %v278, %v466
        %vm513 = vcmp.eq.s32.totalorder %v279, %v462
        %vm514 = vcmp.eq.s32.totalorder %v279, %v466
        %vm515 = vcmp.eq.s32.totalorder %v280, %v462
        %vm516 = vcmp.eq.s32.totalorder %v280, %v466
        %vm517 = vcmp.eq.s32.totalorder %v281, %v462
        %vm518 = vcmp.eq.s32.totalorder %v281, %v466
        %vm519 = vcmp.eq.s32.totalorder %v282, %v462
        %vm520 = vcmp.eq.s32.totalorder %v282, %v466
        %vm521 = vcmp.eq.s32.totalorder %v283, %v462
        %vm522 = vcmp.eq.s32.totalorder %v283, %v466
        %vm523 = vcmp.eq.s32.totalorder %v284, %v462
        %vm524 = vcmp.eq.s32.totalorder %v284, %v466
        %vm525 = vcmp.eq.s32.totalorder %v285, %v462
        %vm526 = vcmp.eq.s32.totalorder %v285, %v466
        %vm527 = vcmp.eq.s32.totalorder %v286, %v462
        %vm528 = vcmp.eq.s32.totalorder %v286, %v466
        %vm529 = vcmp.eq.s32.totalorder %v287, %v462
        %vm530 = vcmp.eq.s32.totalorder %v287, %v466
        %v532 = vlaneseq
        %v533 = vshrl.u32 %v532, 7
        %v534 = vsub.s32 0, %v533
        %v535 = vrot.slane %v248, %v534
        %v536 = vlaneseq
        %v537 = vshrl.u32 %v536, 7
        %v538 = vsub.s32 4, %v537
        %v539 = vrot.slane %v248, %v538
        %v542 = vlaneseq
        %v543 = vshrl.u32 %v542, 7
        %v544 = vsub.s32 0, %v543
        %v545 = vrot.slane %v535, %v544
        %v546 = vlaneseq
        %v547 = vshrl.u32 %v546, 7
        %v548 = vsub.s32 0, %v547
        %v549 = vrot.slane %v539, %v548
        %v550 = vsel %vm467, %v545, 0.0
        %v551 = vsel %vm468, %v549, 0.0
        %v552 = vsel %vm469, %v545, 0.0
        %v553 = vsel %vm470, %v549, 0.0
        %v554 = vsel %vm471, %v545, 0.0
        %v555 = vsel %vm472, %v549, 0.0
        %v556 = vsel %vm473, %v545, 0.0
        %v557 = vsel %vm474, %v549, 0.0
        %v558 = vsel %vm475, %v545, 0.0
        %v559 = vsel %vm476, %v549, 0.0
        %v560 = vsel %vm477, %v545, 0.0
        %v561 = vsel %vm478, %v549, 0.0
        %v562 = vsel %vm479, %v545, 0.0
        %v563 = vsel %vm480, %v549, 0.0
        %v564 = vsel %vm481, %v545, 0.0
        %v565 = vsel %vm482, %v549, 0.0
        %v566 = vsel %vm483, %v545, 0.0
        %v567 = vsel %vm484, %v549, 0.0
        %v568 = vsel %vm485, %v545, 0.0
        %v569 = vsel %vm486, %v549, 0.0
        %v570 = vsel %vm487, %v545, 0.0
        %v571 = vsel %vm488, %v549, 0.0
        %v572 = vsel %vm489, %v545, 0.0
        %v573 = vsel %vm490, %v549, 0.0
        %v574 = vsel %vm491, %v545, 0.0
        %v575 = vsel %vm492, %v549, 0.0
        %v576 = vsel %vm493, %v545, 0.0
        %v577 = vsel %vm494, %v549, 0.0
        %v578 = vsel %vm495, %v545, 0.0
        %v579 = vsel %vm496, %v549, 0.0
        %v580 = vsel %vm497, %v545, 0.0
        %v581 = vsel %vm498, %v549, 0.0
        %v582 = vsel %vm499, %v545, 0.0
        %v583 = vsel %vm500, %v549, 0.0
        %v584 = vsel %vm501, %v545, 0.0
        %v585 = vsel %vm502, %v549, 0.0
        %v586 = vsel %vm503, %v545, 0.0
        %v587 = vsel %vm504, %v549, 0.0
        %v588 = vsel %vm505, %v545, 0.0
        %v589 = vsel %vm506, %v549, 0.0
        %v590 = vsel %vm507, %v545, 0.0
        %v591 = vsel %vm508, %v549, 0.0
        %v592 = vsel %vm509, %v545, 0.0
        %v593 = vsel %vm510, %v549, 0.0
        %v594 = vsel %vm511, %v545, 0.0
        %v595 = vsel %vm512, %v549, 0.0
        %v596 = vsel %vm513, %v545, 0.0
        %v597 = vsel %vm514, %v549, 0.0
        %v598 = vsel %vm515, %v545, 0.0
        %v599 = vsel %vm516, %v549, 0.0
        %v600 = vsel %vm517, %v545, 0.0
        %v601 = vsel %vm518, %v549, 0.0
        %v602 = vsel %vm519, %v545, 0.0
        %v603 = vsel %vm520, %v549, 0.0
        %v604 = vsel %vm521, %v545, 0.0
        %v605 = vsel %vm522, %v549, 0.0
        %v606 = vsel %vm523, %v545, 0.0
        %v607 = vsel %vm524, %v549, 0.0
        %v608 = vsel %vm525, %v545, 0.0
        %v609 = vsel %vm526, %v549, 0.0
        %v610 = vsel %vm527, %v545, 0.0
        %v611 = vsel %vm528, %v549, 0.0
        %v612 = vsel %vm529, %v545, 0.0
        %v613 = vsel %vm530, %v549, 0.0
        %v614 = vadd.f32 %v387, %v550
        %v615 = vadd.f32 %v388, %v551
        %v616 = vadd.f32 %v389, %v552
        %v617 = vadd.f32 %v390, %v553
        %v618 = vadd.f32 %v391, %v554
        %v619 = vadd.f32 %v392, %v555
        %v620 = vadd.f32 %v393, %v556
        %v621 = vadd.f32 %v394, %v557
        %v622 = vadd.f32 %v395, %v558
        %v623 = vadd.f32 %v396, %v559
        %v624 = vadd.f32 %v397, %v560
        %v625 = vadd.f32 %v398, %v561
        %v626 = vadd.f32 %v399, %v562
        %v627 = vadd.f32 %v400, %v563
        %v628 = vadd.f32 %v401, %v564
        %v629 = vadd.f32 %v402, %v565
        %v630 = vadd.f32 %v403, %v566
        %v631 = vadd.f32 %v404, %v567
        %v632 = vadd.f32 %v405, %v568
        %v633 = vadd.f32 %v406, %v569
        %v634 = vadd.f32 %v407, %v570
        %v635 = vadd.f32 %v408, %v571
        %v636 = vadd.f32 %v409, %v572
        %v637 = vadd.f32 %v410, %v573
        %v638 = vadd.f32 %v411, %v574
        %v639 = vadd.f32 %v412, %v575
        %v640 = vadd.f32 %v413, %v576
        %v641 = vadd.f32 %v414, %v577
        %v642 = vadd.f32 %v415, %v578
        %v643 = vadd.f32 %v416, %v579
        %v644 = vadd.f32 %v417, %v580
        %v645 = vadd.f32 %v418, %v581
        %v646 = vadd.f32 %v419, %v582
        %v647 = vadd.f32 %v420, %v583
        %v648 = vadd.f32 %v421, %v584
        %v649 = vadd.f32 %v422, %v585
        %v650 = vadd.f32 %v423, %v586
        %v651 = vadd.f32 %v424, %v587
        %v652 = vadd.f32 %v425, %v588
        %v653 = vadd.f32 %v426, %v589
        %v654 = vadd.f32 %v427, %v590
        %v655 = vadd.f32 %v428, %v591
        %v656 = vadd.f32 %v429, %v592
        %v657 = vadd.f32 %v430, %v593
        %v658 = vadd.f32 %v431, %v594
        %v659 = vadd.f32 %v432, %v595
        %v660 = vadd.f32 %v433, %v596
        %v661 = vadd.f32 %v434, %v597
        %v662 = vadd.f32 %v435, %v598
        %v663 = vadd.f32 %v436, %v599
        %v664 = vadd.f32 %v437, %v600
        %v665 = vadd.f32 %v438, %v601
        %v666 = vadd.f32 %v439, %v602
        %v667 = vadd.f32 %v440, %v603
        %v668 = vadd.f32 %v441, %v604
        %v669 = vadd.f32 %v442, %v605
        %v670 = vadd.f32 %v443, %v606
        %v671 = vadd.f32 %v444, %v607
        %v672 = vadd.f32 %v445, %v608
        %v673 = vadd.f32 %v446, %v609
        %v674 = vadd.f32 %v447, %v610
        %v675 = vadd.f32 %v448, %v611
        %v676 = vadd.f32 %v449, %v612
        %v677 = vadd.f32 %v450, %v613
        %v678 = vlaneseq
        %v679 = vshrl.u32 %v678, 7
        %v680 = vsub.s32 1, %v679
        %v681 = vrot.slane %v240, %v680
        %v682 = vlaneseq
        %v683 = vshrl.u32 %v682, 7
        %v684 = vsub.s32 5, %v683
        %v685 = vrot.slane %v240, %v684
        %v686 = vlaneseq
        %v687 = vshrl.u32 %v686, 7
        %v688 = vsub.s32 1, %v687
        %v689 = vrot.slane %v681, %v688
        %v690 = vlaneseq
        %v691 = vshrl.u32 %v690, 7
        %v692 = vsub.s32 1, %v691
        %v693 = vrot.slane %v685, %v692
        %vm694 = vcmp.eq.s32.totalorder %v256, %v689
        %vm695 = vcmp.eq.s32.totalorder %v256, %v693
        %vm696 = vcmp.eq.s32.totalorder %v257, %v689
        %vm697 = vcmp.eq.s32.totalorder %v257, %v693
        %vm698 = vcmp.eq.s32.totalorder %v258, %v689
        %vm699 = vcmp.eq.s32.totalorder %v258, %v693
        %vm700 = vcmp.eq.s32.totalorder %v259, %v689
        %vm701 = vcmp.eq.s32.totalorder %v259, %v693
        %vm702 = vcmp.eq.s32.totalorder %v260, %v689
        %vm703 = vcmp.eq.s32.totalorder %v260, %v693
        %vm704 = vcmp.eq.s32.totalorder %v261, %v689
        %vm705 = vcmp.eq.s32.totalorder %v261, %v693
        %vm706 = vcmp.eq.s32.totalorder %v262, %v689
        %vm707 = vcmp.eq.s32.totalorder %v262, %v693
        %vm708 = vcmp.eq.s32.totalorder %v263, %v689
        %vm709 = vcmp.eq.s32.totalorder %v263, %v693
        %vm710 = vcmp.eq.s32.totalorder %v264, %v689
        %vm711 = vcmp.eq.s32.totalorder %v264, %v693
        %vm712 = vcmp.eq.s32.totalorder %v265, %v689
        %vm713 = vcmp.eq.s32.totalorder %v265, %v693
        %vm714 = vcmp.eq.s32.totalorder %v266, %v689
        %vm715 = vcmp.eq.s32.totalorder %v266, %v693
        %vm716 = vcmp.eq.s32.totalorder %v267, %v689
        %vm717 = vcmp.eq.s32.totalorder %v267, %v693
        %vm718 = vcmp.eq.s32.totalorder %v268, %v689
        %vm719 = vcmp.eq.s32.totalorder %v268, %v693
        %vm720 = vcmp.eq.s32.totalorder %v269, %v689
        %vm721 = vcmp.eq.s32.totalorder %v269, %v693
        %vm722 = vcmp.eq.s32.totalorder %v270, %v689
        %vm723 = vcmp.eq.s32.totalorder %v270, %v693
        %vm724 = vcmp.eq.s32.totalorder %v271, %v689
        %vm725 = vcmp.eq.s32.totalorder %v271, %v693
        %vm726 = vcmp.eq.s32.totalorder %v272, %v689
        %vm727 = vcmp.eq.s32.totalorder %v272, %v693
        %vm728 = vcmp.eq.s32.totalorder %v273, %v689
        %vm729 = vcmp.eq.s32.totalorder %v273, %v693
        %vm730 = vcmp.eq.s32.totalorder %v274, %v689
        %vm731 = vcmp.eq.s32.totalorder %v274, %v693
        %vm732 = vcmp.eq.s32.totalorder %v275, %v689
        %vm733 = vcmp.eq.s32.totalorder %v275, %v693
        %vm734 = vcmp.eq.s32.totalorder %v276, %v689
        %vm735 = vcmp.eq.s32.totalorder %v276, %v693
        %vm736 = vcmp.eq.s32.totalorder %v277, %v689
        %vm737 = vcmp.eq.s32.totalorder %v277, %v693
        %vm738 = vcmp.eq.s32.totalorder %v278, %v689
        %vm739 = vcmp.eq.s32.totalorder %v278, %v693
        %vm740 = vcmp.eq.s32.totalorder %v279, %v689
        %vm741 = vcmp.eq.s32.totalorder %v279, %v693
        %vm742 = vcmp.eq.s32.totalorder %v280, %v689
        %vm743 = vcmp.eq.s32.totalorder %v280, %v693
        %vm744 = vcmp.eq.s32.totalorder %v281, %v689
        %vm745 = vcmp.eq.s32.totalorder %v281, %v693
        %vm746 = vcmp.eq.s32.totalorder %v282, %v689
        %vm747 = vcmp.eq.s32.totalorder %v282, %v693
        %vm748 = vcmp.eq.s32.totalorder %v283, %v689
        %vm749 = vcmp.eq.s32.totalorder %v283, %v693
        %vm750 = vcmp.eq.s32.totalorder %v284, %v689
        %vm751 = vcmp.eq.s32.totalorder %v284, %v693
        %vm752 = vcmp.eq.s32.totalorder %v285, %v689
        %vm753 = vcmp.eq.s32.totalorder %v285, %v693
        %vm754 = vcmp.eq.s32.totalorder %v286, %v689
        %vm755 = vcmp.eq.s32.totalorder %v286, %v693
        %vm756 = vcmp.eq.s32.totalorder %v287, %v689
        %vm757 = vcmp.eq.s32.totalorder %v287, %v693
        %v759 = vlaneseq
        %v760 = vshrl.u32 %v759, 7
        %v761 = vsub.s32 0, %v760
        %v762 = vrot.slane %v253, %v761
        %v763 = vlaneseq
        %v764 = vshrl.u32 %v763, 7
        %v765 = vsub.s32 4, %v764
        %v766 = vrot.slane %v253, %v765
        %v769 = vlaneseq
        %v770 = vshrl.u32 %v769, 7
        %v771 = vsub.s32 0, %v770
        %v772 = vrot.slane %v762, %v771
        %v773 = vlaneseq
        %v774 = vshrl.u32 %v773, 7
        %v775 = vsub.s32 0, %v774
        %v776 = vrot.slane %v766, %v775
        %v777 = vsel %vm694, %v772, 0.0
        %v778 = vsel %vm695, %v776, 0.0
        %v779 = vsel %vm696, %v772, 0.0
        %v780 = vsel %vm697, %v776, 0.0
        %v781 = vsel %vm698, %v772, 0.0
        %v782 = vsel %vm699, %v776, 0.0
        %v783 = vsel %vm700, %v772, 0.0
        %v784 = vsel %vm701, %v776, 0.0
        %v785 = vsel %vm702, %v772, 0.0
        %v786 = vsel %vm703, %v776, 0.0
        %v787 = vsel %vm704, %v772, 0.0
        %v788 = vsel %vm705, %v776, 0.0
        %v789 = vsel %vm706, %v772, 0.0
        %v790 = vsel %vm707, %v776, 0.0
        %v791 = vsel %vm708, %v772, 0.0
        %v792 = vsel %vm709, %v776, 0.0
        %v793 = vsel %vm710, %v772, 0.0
        %v794 = vsel %vm711, %v776, 0.0
        %v795 = vsel %vm712, %v772, 0.0
        %v796 = vsel %vm713, %v776, 0.0
        %v797 = vsel %vm714, %v772, 0.0
        %v798 = vsel %vm715, %v776, 0.0
        %v799 = vsel %vm716, %v772, 0.0
        %v800 = vsel %vm717, %v776, 0.0
        %v801 = vsel %vm718, %v772, 0.0
        %v802 = vsel %vm719, %v776, 0.0
        %v803 = vsel %vm720, %v772, 0.0
        %v804 = vsel %vm721, %v776, 0.0
        %v805 = vsel %vm722, %v772, 0.0
        %v806 = vsel %vm723, %v776, 0.0
        %v807 = vsel %vm724, %v772, 0.0
        %v808 = vsel %vm725, %v776, 0.0
        %v809 = vsel %vm726, %v772, 0.0
        %v810 = vsel %vm727, %v776, 0.0
        %v811 = vsel %vm728, %v772, 0.0
        %v812 = vsel %vm729, %v776, 0.0
        %v813 = vsel %vm730, %v772, 0.0
        %v814 = vsel %vm731, %v776, 0.0
        %v815 = vsel %vm732, %v772, 0.0
        %v816 = vsel %vm733, %v776, 0.0
        %v817 = vsel %vm734, %v772, 0.0
        %v818 = vsel %vm735, %v776, 0.0
        %v819 = vsel %vm736, %v772, 0.0
        %v820 = vsel %vm737, %v776, 0.0
        %v821 = vsel %vm738, %v772, 0.0
        %v822 = vsel %vm739, %v776, 0.0
        %v823 = vsel %vm740, %v772, 0.0
        %v824 = vsel %vm741, %v776, 0.0
        %v825 = vsel %vm742, %v772, 0.0
        %v826 = vsel %vm743, %v776, 0.0
        %v827 = vsel %vm744, %v772, 0.0
        %v828 = vsel %vm745, %v776, 0.0
        %v829 = vsel %vm746, %v772, 0.0
        %v830 = vsel %vm747, %v776, 0.0
        %v831 = vsel %vm748, %v772, 0.0
        %v832 = vsel %vm749, %v776, 0.0
        %v833 = vsel %vm750, %v772, 0.0
        %v834 = vsel %vm751, %v776, 0.0
        %v835 = vsel %vm752, %v772, 0.0
        %v836 = vsel %vm753, %v776, 0.0
        %v837 = vsel %vm754, %v772, 0.0
        %v838 = vsel %vm755, %v776, 0.0
        %v839 = vsel %vm756, %v772, 0.0
        %v840 = vsel %vm757, %v776, 0.0
        %v841 = vadd.f32 %v614, %v777
        %v842 = vadd.f32 %v615, %v778
        %v843 = vadd.f32 %v616, %v779
        %v844 = vadd.f32 %v617, %v780
        %v845 = vadd.f32 %v618, %v781
        %v846 = vadd.f32 %v619, %v782
        %v847 = vadd.f32 %v620, %v783
        %v848 = vadd.f32 %v621, %v784
        %v849 = vadd.f32 %v622, %v785
        %v850 = vadd.f32 %v623, %v786
        %v851 = vadd.f32 %v624, %v787
        %v852 = vadd.f32 %v625, %v788
        %v853 = vadd.f32 %v626, %v789
        %v854 = vadd.f32 %v627, %v790
        %v855 = vadd.f32 %v628, %v791
        %v856 = vadd.f32 %v629, %v792
        %v857 = vadd.f32 %v630, %v793
        %v858 = vadd.f32 %v631, %v794
        %v859 = vadd.f32 %v632, %v795
        %v860 = vadd.f32 %v633, %v796
        %v861 = vadd.f32 %v634, %v797
        %v862 = vadd.f32 %v635, %v798
        %v863 = vadd.f32 %v636, %v799
        %v864 = vadd.f32 %v637, %v800
        %v865 = vadd.f32 %v638, %v801
        %v866 = vadd.f32 %v639, %v802
        %v867 = vadd.f32 %v640, %v803
        %v868 = vadd.f32 %v641, %v804
        %v869 = vadd.f32 %v642, %v805
        %v870 = vadd.f32 %v643, %v806
        %v871 = vadd.f32 %v644, %v807
        %v872 = vadd.f32 %v645, %v808
        %v873 = vadd.f32 %v646, %v809
        %v874 = vadd.f32 %v647, %v810
        %v875 = vadd.f32 %v648, %v811
        %v876 = vadd.f32 %v649, %v812
        %v877 = vadd.f32 %v650, %v813
        %v878 = vadd.f32 %v651, %v814
        %v879 = vadd.f32 %v652, %v815
        %v880 = vadd.f32 %v653, %v816
        %v881 = vadd.f32 %v654, %v817
        %v882 = vadd.f32 %v655, %v818
        %v883 = vadd.f32 %v656, %v819
        %v884 = vadd.f32 %v657, %v820
        %v885 = vadd.f32 %v658, %v821
        %v886 = vadd.f32 %v659, %v822
        %v887 = vadd.f32 %v660, %v823
        %v888 = vadd.f32 %v661, %v824
        %v889 = vadd.f32 %v662, %v825
        %v890 = vadd.f32 %v663, %v826
        %v891 = vadd.f32 %v664, %v827
        %v892 = vadd.f32 %v665, %v828
        %v893 = vadd.f32 %v666, %v829
        %v894 = vadd.f32 %v667, %v830
        %v895 = vadd.f32 %v668, %v831
        %v896 = vadd.f32 %v669, %v832
        %v897 = vadd.f32 %v670, %v833
        %v898 = vadd.f32 %v671, %v834
        %v899 = vadd.f32 %v672, %v835
        %v900 = vadd.f32 %v673, %v836
        %v901 = vadd.f32 %v674, %v837
        %v902 = vadd.f32 %v675, %v838
        %v903 = vadd.f32 %v676, %v839
        %v904 = vadd.f32 %v677, %v840
        %v905 = vlaneseq
        %v906 = vshrl.u32 %v905, 7
        %v907 = vsub.s32 1, %v906
        %v908 = vrot.slane %v241, %v907
        %v909 = vlaneseq
        %v910 = vshrl.u32 %v909, 7
        %v911 = vsub.s32 5, %v910
        %v912 = vrot.slane %v241, %v911
        %v913 = vlaneseq
        %v914 = vshrl.u32 %v913, 7
        %v915 = vsub.s32 1, %v914
        %v916 = vrot.slane %v908, %v915
        %v917 = vlaneseq
        %v918 = vshrl.u32 %v917, 7
        %v919 = vsub.s32 1, %v918
        %v920 = vrot.slane %v912, %v919
        %vm921 = vcmp.eq.s32.totalorder %v256, %v916
        %vm922 = vcmp.eq.s32.totalorder %v256, %v920
        %vm923 = vcmp.eq.s32.totalorder %v257, %v916
        %vm924 = vcmp.eq.s32.totalorder %v257, %v920
        %vm925 = vcmp.eq.s32.totalorder %v258, %v916
        %vm926 = vcmp.eq.s32.totalorder %v258, %v920
        %vm927 = vcmp.eq.s32.totalorder %v259, %v916
        %vm928 = vcmp.eq.s32.totalorder %v259, %v920
        %vm929 = vcmp.eq.s32.totalorder %v260, %v916
        %vm930 = vcmp.eq.s32.totalorder %v260, %v920
        %vm931 = vcmp.eq.s32.totalorder %v261, %v916
        %vm932 = vcmp.eq.s32.totalorder %v261, %v920
        %vm933 = vcmp.eq.s32.totalorder %v262, %v916
        %vm934 = vcmp.eq.s32.totalorder %v262, %v920
        %vm935 = vcmp.eq.s32.totalorder %v263, %v916
        %vm936 = vcmp.eq.s32.totalorder %v263, %v920
        %vm937 = vcmp.eq.s32.totalorder %v264, %v916
        %vm938 = vcmp.eq.s32.totalorder %v264, %v920
        %vm939 = vcmp.eq.s32.totalorder %v265, %v916
        %vm940 = vcmp.eq.s32.totalorder %v265, %v920
        %vm941 = vcmp.eq.s32.totalorder %v266, %v916
        %vm942 = vcmp.eq.s32.totalorder %v266, %v920
        %vm943 = vcmp.eq.s32.totalorder %v267, %v916
        %vm944 = vcmp.eq.s32.totalorder %v267, %v920
        %vm945 = vcmp.eq.s32.totalorder %v268, %v916
        %vm946 = vcmp.eq.s32.totalorder %v268, %v920
        %vm947 = vcmp.eq.s32.totalorder %v269, %v916
        %vm948 = vcmp.eq.s32.totalorder %v269, %v920
        %vm949 = vcmp.eq.s32.totalorder %v270, %v916
        %vm950 = vcmp.eq.s32.totalorder %v270, %v920
        %vm951 = vcmp.eq.s32.totalorder %v271, %v916
        %vm952 = vcmp.eq.s32.totalorder %v271, %v920
        %vm953 = vcmp.eq.s32.totalorder %v272, %v916
        %vm954 = vcmp.eq.s32.totalorder %v272, %v920
        %vm955 = vcmp.eq.s32.totalorder %v273, %v916
        %vm956 = vcmp.eq.s32.totalorder %v273, %v920
        %vm957 = vcmp.eq.s32.totalorder %v274, %v916
        %vm958 = vcmp.eq.s32.totalorder %v274, %v920
        %vm959 = vcmp.eq.s32.totalorder %v275, %v916
        %vm960 = vcmp.eq.s32.totalorder %v275, %v920
        %vm961 = vcmp.eq.s32.totalorder %v276, %v916
        %vm962 = vcmp.eq.s32.totalorder %v276, %v920
        %vm963 = vcmp.eq.s32.totalorder %v277, %v916
        %vm964 = vcmp.eq.s32.totalorder %v277, %v920
        %vm965 = vcmp.eq.s32.totalorder %v278, %v916
        %vm966 = vcmp.eq.s32.totalorder %v278, %v920
        %vm967 = vcmp.eq.s32.totalorder %v279, %v916
        %vm968 = vcmp.eq.s32.totalorder %v279, %v920
        %vm969 = vcmp.eq.s32.totalorder %v280, %v916
        %vm970 = vcmp.eq.s32.totalorder %v280, %v920
        %vm971 = vcmp.eq.s32.totalorder %v281, %v916
        %vm972 = vcmp.eq.s32.totalorder %v281, %v920
        %vm973 = vcmp.eq.s32.totalorder %v282, %v916
        %vm974 = vcmp.eq.s32.totalorder %v282, %v920
        %vm975 = vcmp.eq.s32.totalorder %v283, %v916
        %vm976 = vcmp.eq.s32.totalorder %v283, %v920
        %vm977 = vcmp.eq.s32.totalorder %v284, %v916
        %vm978 = vcmp.eq.s32.totalorder %v284, %v920
        %vm979 = vcmp.eq.s32.totalorder %v285, %v916
        %vm980 = vcmp.eq.s32.totalorder %v285, %v920
        %vm981 = vcmp.eq.s32.totalorder %v286, %v916
        %vm982 = vcmp.eq.s32.totalorder %v286, %v920
        %vm983 = vcmp.eq.s32.totalorder %v287, %v916
        %vm984 = vcmp.eq.s32.totalorder %v287, %v920
        %v986 = vlaneseq
        %v987 = vshrl.u32 %v986, 7
        %v988 = vsub.s32 0, %v987
        %v989 = vrot.slane %v254, %v988
        %v990 = vlaneseq
        %v991 = vshrl.u32 %v990, 7
        %v992 = vsub.s32 4, %v991
        %v993 = vrot.slane %v254, %v992
        %v996 = vlaneseq
        %v997 = vshrl.u32 %v996, 7
        %v998 = vsub.s32 0, %v997
        %v999 = vrot.slane %v989, %v998
        %v1000 = vlaneseq
        %v1001 = vshrl.u32 %v1000, 7
        %v1002 = vsub.s32 0, %v1001
        %v1003 = vrot.slane %v993, %v1002
        %v1004 = vsel %vm921, %v999, 0.0
        %v1005 = vsel %vm922, %v1003, 0.0
        %v1006 = vsel %vm923, %v999, 0.0
        %v1007 = vsel %vm924, %v1003, 0.0
        %v1008 = vsel %vm925, %v999, 0.0
        %v1009 = vsel %vm926, %v1003, 0.0
        %v1010 = vsel %vm927, %v999, 0.0
        %v1011 = vsel %vm928, %v1003, 0.0
        %v1012 = vsel %vm929, %v999, 0.0
        %v1013 = vsel %vm930, %v1003, 0.0
        %v1014 = vsel %vm931, %v999, 0.0
        %v1015 = vsel %vm932, %v1003, 0.0
        %v1016 = vsel %vm933, %v999, 0.0
        %v1017 = vsel %vm934, %v1003, 0.0
        %v1018 = vsel %vm935, %v999, 0.0
        %v1019 = vsel %vm936, %v1003, 0.0
        %v1020 = vsel %vm937, %v999, 0.0
        %v1021 = vsel %vm938, %v1003, 0.0
        %v1022 = vsel %vm939, %v999, 0.0
        %v1023 = vsel %vm940, %v1003, 0.0
        %v1024 = vsel %vm941, %v999, 0.0
        %v1025 = vsel %vm942, %v1003, 0.0
        %v1026 = vsel %vm943, %v999, 0.0
        %v1027 = vsel %vm944, %v1003, 0.0
        %v1028 = vsel %vm945, %v999, 0.0
        %v1029 = vsel %vm946, %v1003, 0.0
        %v1030 = vsel %vm947, %v999, 0.0
        %v1031 = vsel %vm948, %v1003, 0.0
        %v1032 = vsel %vm949, %v999, 0.0
        %v1033 = vsel %vm950, %v1003, 0.0
        %v1034 = vsel %vm951, %v999, 0.0
        %v1035 = vsel %vm952, %v1003, 0.0
        %v1036 = vsel %vm953, %v999, 0.0
        %v1037 = vsel %vm954, %v1003, 0.0
        %v1038 = vsel %vm955, %v999, 0.0
        %v1039 = vsel %vm956, %v1003, 0.0
        %v1040 = vsel %vm957, %v999, 0.0
        %v1041 = vsel %vm958, %v1003, 0.0
        %v1042 = vsel %vm959, %v999, 0.0
        %v1043 = vsel %vm960, %v1003, 0.0
        %v1044 = vsel %vm961, %v999, 0.0
        %v1045 = vsel %vm962, %v1003, 0.0
        %v1046 = vsel %vm963, %v999, 0.0
        %v1047 = vsel %vm964, %v1003, 0.0
        %v1048 = vsel %vm965, %v999, 0.0
        %v1049 = vsel %vm966, %v1003, 0.0
        %v1050 = vsel %vm967, %v999, 0.0
        %v1051 = vsel %vm968, %v1003, 0.0
        %v1052 = vsel %vm969, %v999, 0.0
        %v1053 = vsel %vm970, %v1003, 0.0
        %v1054 = vsel %vm971, %v999, 0.0
        %v1055 = vsel %vm972, %v1003, 0.0
        %v1056 = vsel %vm973, %v999, 0.0
        %v1057 = vsel %vm974, %v1003, 0.0
        %v1058 = vsel %vm975, %v999, 0.0
        %v1059 = vsel %vm976, %v1003, 0.0
        %v1060 = vsel %vm977, %v999, 0.0
        %v1061 = vsel %vm978, %v1003, 0.0
        %v1062 = vsel %vm979, %v999, 0.0
        %v1063 = vsel %vm980, %v1003, 0.0
        %v1064 = vsel %vm981, %v999, 0.0
        %v1065 = vsel %vm982, %v1003, 0.0
        %v1066 = vsel %vm983, %v999, 0.0
        %v1067 = vsel %vm984, %v1003, 0.0
        %v1068 = vadd.f32 %v841, %v1004
        %v1069 = vadd.f32 %v842, %v1005
        %v1070 = vadd.f32 %v843, %v1006
        %v1071 = vadd.f32 %v844, %v1007
        %v1072 = vadd.f32 %v845, %v1008
        %v1073 = vadd.f32 %v846, %v1009
        %v1074 = vadd.f32 %v847, %v1010
        %v1075 = vadd.f32 %v848, %v1011
        %v1076 = vadd.f32 %v849, %v1012
        %v1077 = vadd.f32 %v850, %v1013
        %v1078 = vadd.f32 %v851, %v1014
        %v1079 = vadd.f32 %v852, %v1015
        %v1080 = vadd.f32 %v853, %v1016
        %v1081 = vadd.f32 %v854, %v1017
        %v1082 = vadd.f32 %v855, %v1018
        %v1083 = vadd.f32 %v856, %v1019
        %v1084 = vadd.f32 %v857, %v1020
        %v1085 = vadd.f32 %v858, %v1021
        %v1086 = vadd.f32 %v859, %v1022
        %v1087 = vadd.f32 %v860, %v1023
        %v1088 = vadd.f32 %v861, %v1024
        %v1089 = vadd.f32 %v862, %v1025
        %v1090 = vadd.f32 %v863, %v1026
        %v1091 = vadd.f32 %v864, %v1027
        %v1092 = vadd.f32 %v865, %v1028
        %v1093 = vadd.f32 %v866, %v1029
        %v1094 = vadd.f32 %v867, %v1030
        %v1095 = vadd.f32 %v868, %v1031
        %v1096 = vadd.f32 %v869, %v1032
        %v1097 = vadd.f32 %v870, %v1033
        %v1098 = vadd.f32 %v871, %v1034
        %v1099 = vadd.f32 %v872, %v1035
        %v1100 = vadd.f32 %v873, %v1036
        %v1101 = vadd.f32 %v874, %v1037
        %v1102 = vadd.f32 %v875, %v1038
        %v1103 = vadd.f32 %v876, %v1039
        %v1104 = vadd.f32 %v877, %v1040
        %v1105 = vadd.f32 %v878, %v1041
        %v1106 = vadd.f32 %v879, %v1042
        %v1107 = vadd.f32 %v880, %v1043
        %v1108 = vadd.f32 %v881, %v1044
        %v1109 = vadd.f32 %v882, %v1045
        %v1110 = vadd.f32 %v883, %v1046
        %v1111 = vadd.f32 %v884, %v1047
        %v1112 = vadd.f32 %v885, %v1048
        %v1113 = vadd.f32 %v886, %v1049
        %v1114 = vadd.f32 %v887, %v1050
        %v1115 = vadd.f32 %v888, %v1051
        %v1116 = vadd.f32 %v889, %v1052
        %v1117 = vadd.f32 %v890, %v1053
        %v1118 = vadd.f32 %v891, %v1054
        %v1119 = vadd.f32 %v892, %v1055
        %v1120 = vadd.f32 %v893, %v1056
        %v1121 = vadd.f32 %v894, %v1057
        %v1122 = vadd.f32 %v895, %v1058
        %v1123 = vadd.f32 %v896, %v1059
        %v1124 = vadd.f32 %v897, %v1060
        %v1125 = vadd.f32 %v898, %v1061
        %v1126 = vadd.f32 %v899, %v1062
        %v1127 = vadd.f32 %v900, %v1063
        %v1128 = vadd.f32 %v901, %v1064
        %v1129 = vadd.f32 %v902, %v1065
        %v1130 = vadd.f32 %v903, %v1066
        %v1131 = vadd.f32 %v904, %v1067
        %v1132 = vld [vmem:[%s181] sm:$0xff]
        %v1134 = vcombine.high %v1132, %v1132
        %1136 = vmatprep.subr.mxu0 %v1069
        %1137 = vmatpush1.msra.mxu0 %v1068
        %1138 = vmatprep.subr.mxu0 %v1071
        %1139 = vmatpush1.msra.mxu0 %v1070
        %1140 = vmatprep.subr.mxu0 %v1073
        %1141 = vmatpush1.msra.mxu0 %v1072
        %1142 = vmatprep.subr.mxu0 %v1075
        %1143 = vmatpush1.msra.mxu0 %v1074
        %1144 = vmatprep.subr.mxu0 %v1077
        %1145 = vmatpush1.msra.mxu0 %v1076
        %1146 = vmatprep.subr.mxu0 %v1079
        %1147 = vmatpush1.msra.mxu0 %v1078
        %1148 = vmatprep.subr.mxu0 %v1081
        %1149 = vmatpush1.msra.mxu0 %v1080
        %1150 = vmatprep.subr.mxu0 %v1083
        %1151 = vmatpush1.msra.mxu0 %v1082
        %1152 = vmatprep.subr.mxu0 %v1085
        %1153 = vmatpush1.msra.mxu0 %v1084
        %1154 = vmatprep.subr.mxu0 %v1087
        %1155 = vmatpush1.msra.mxu0 %v1086
        %1156 = vmatprep.subr.mxu0 %v1089
        %1157 = vmatpush1.msra.mxu0 %v1088
        %1158 = vmatprep.subr.mxu0 %v1091
        %1159 = vmatpush1.msra.mxu0 %v1090
        %1160 = vmatprep.subr.mxu0 %v1093
        %1161 = vmatpush1.msra.mxu0 %v1092
        %1162 = vmatprep.subr.mxu0 %v1095
        %1163 = vmatpush1.msra.mxu0 %v1094
        %1164 = vmatprep.subr.mxu0 %v1097
        %1165 = vmatpush1.msra.mxu0 %v1096
        %1166 = vmatprep.subr.mxu0 %v1099
        %1167 = vmatpush1.msra.mxu0 %v1098
        %1168 = vmatprep.subr.mxu0 %v1101
        %1169 = vmatpush1.msra.mxu0 %v1100
        %1170 = vmatprep.subr.mxu0 %v1103
        %1171 = vmatpush1.msra.mxu0 %v1102
        %1172 = vmatprep.subr.mxu0 %v1105
        %1173 = vmatpush1.msra.mxu0 %v1104
        %1174 = vmatprep.subr.mxu0 %v1107
        %1175 = vmatpush1.msra.mxu0 %v1106
        %1176 = vmatprep.subr.mxu0 %v1109
        %1177 = vmatpush1.msra.mxu0 %v1108
        %1178 = vmatprep.subr.mxu0 %v1111
        %1179 = vmatpush1.msra.mxu0 %v1110
        %1180 = vmatprep.subr.mxu0 %v1113
        %1181 = vmatpush1.msra.mxu0 %v1112
        %1182 = vmatprep.subr.mxu0 %v1115
        %1183 = vmatpush1.msra.mxu0 %v1114
        %1184 = vmatprep.subr.mxu0 %v1117
        %1185 = vmatpush1.msra.mxu0 %v1116
        %1186 = vmatprep.subr.mxu0 %v1119
        %1187 = vmatpush1.msra.mxu0 %v1118
        %1188 = vmatprep.subr.mxu0 %v1121
        %1189 = vmatpush1.msra.mxu0 %v1120
        %1190 = vmatprep.subr.mxu0 %v1123
        %1191 = vmatpush1.msra.mxu0 %v1122
        %1192 = vmatprep.subr.mxu0 %v1125
        %1193 = vmatpush1.msra.mxu0 %v1124
        %1194 = vmatprep.subr.mxu0 %v1127
        %1195 = vmatpush1.msra.mxu0 %v1126
        %1196 = vmatprep.subr.mxu0 %v1129
        %1197 = vmatpush1.msra.mxu0 %v1128
        %1198 = vmatprep.subr.mxu0 %v1131
        %1199 = vmatpush1.msra.mxu0 %v1130
        %1200 = vmatprep.mubr.f32.mxu0 %v1134
        %1201 = vmatmul.mubr.f32.gmra.mrb[0].mxu0 %v1132
        %v1202 = vpop.f32.mrb[0].mxu0
        %v1203 = vadd.f32 0.0, %v1202
        %v1204 = vpop.f32.mrb[0].mxu0
        %v1205 = vadd.f32 0.0, %v1204
        %1206 = vdwg.mxu0
        %v1209 = vcombine.low %v1203, %v1205
        %1211 = vst [vmem:[%s215] sm:$0xff] %v1209
        %s1212 = sand.u32 %s98, 1
        %s1213 = scalar_lea.sflag [#allocation4], %s1212
        %s1214 = sand.u32 %s98, 1
        %s1215 = smul.addr %s1214, 8
        %s1216 = scalar_lea.vmem [#allocation7], %s1215
        // Predicated region
        $region37: #{tpu_custom_call.1} parent=27 // pred_check
          %p1217 = pneg %p108
        $region38: #{tpu_custom_call.1} parent=27 // pred_check_branch
          %1219 = sbr.rel (%p1217) target = $region40
        $region39: #{tpu_custom_call.1} parent=27 // pred_region
          %s1220 = smul.u32 2, %s27
          %s1222 = ssub.s32 128, 128
          %1223 = vsyncadd %s1213, %s1222
          %s1224 = smul.addr %s26, 2
          %s1225 = sadd.s32 %s1220, %s1224
          %s1226 = smul.addr %s1225, 64
          %s1227 = scalar_lea.hbm %s2, %s1226
          %s1229 = sshll.u32 %s1216, 4
          %s1230 = int_to_ptr.vmem [resolvable:$true] %s1229
          %1232 = dma.vmem_to_hbm [thread:$0]  %s1230, 128, %s1227, %s1213
        $region40: #{tpu_custom_call.1} parent=27 // pred_fallthru
          _
      $region28: #{tpu_custom_call.1} parent=5 // pred_fallthru
        _
      %p1233 = scmp.le.s32.totalorder 2, %s17
      // Predicated region
      $region41: #{tpu_custom_call.1} parent=5 // pred_check
        %p1234 = pneg %p1233
      $region42: #{tpu_custom_call.1} parent=5 // pred_check_branch
        %1236 = sbr.rel (%p1234) target = $region44
      $region43: #{tpu_custom_call.1} parent=5 // pred_region
        %s1237 = ssub.s32 %s17, 2
        // Predicated region
        $region45: #{tpu_custom_call.1} parent=43 // pred_check
          %p1238 = pneg %p114
        $region46: #{tpu_custom_call.1} parent=43 // pred_check_branch
          %1240 = sbr.rel (%p1238) target = $region48
        $region47: #{tpu_custom_call.1} parent=43 // pred_region
          %s1241 = sand.u32 %s99, 1
          %s1242 = scalar_lea.sflag [#allocation4], %s1241
          %s1243 = sand.u32 %s99, 1
          %s1244 = smul.addr %s1243, 8
          %s1245 = scalar_lea.vmem [#allocation7], %s1244
          %1246 = dma.done %s1242, 128
        $region48: #{tpu_custom_call.1} parent=43 // pred_fallthru
          _
      $region44: #{tpu_custom_call.1} parent=5 // pred_fallthru
        _
    $region6: #{tpu_custom_call.1} parent=1 // loop_footer
      %s21 = sadd.s32 1, %s17
    $region7: #{tpu_custom_call.1} parent=1 // loop_footer_branch
      %16 = sbr.rel target = $region3
    $region8: #{tpu_custom_call.1} parent=1 // loop_exit
      _
    %1247 = vsyncpa [#allocation3], 1
    %s1248 = scalar_lea.sflag [#allocation3], 1
    %1249 = vsyncpa %s1248, 1
    %1250 = vsyncpa [#allocation6], 1
    %s1251 = scalar_lea.sflag [#allocation6], 1
    %1252 = vsyncpa %s1251, 1
    %1253 = vsyncpa [#allocation4], 1
    %s1254 = scalar_lea.sflag [#allocation4], 1
    %1255 = vsyncpa %s1254, 1

</llo_original>
